<compile_context>
chip_gen: v6e
topology: v6e:2x2x1
jax: 0.10.0
libtpu: 0.0.40
codegen_flags: <defaults>
</compile_context>

<pallas_src>
import jax
import jax.numpy as jnp
from jax.experimental import pallas as pl
from jax.experimental.pallas import tpu as pltpu

INPUT_SIZE = 30                      # breast-cancer feature count (x_train.shape[1])
NUM_CLASSES = 2
PACK = 128 // NUM_CLASSES            # 64 batch rows packed per super-row
PACKED_K = PACK * INPUT_SIZE         # 1920 = 15 * 128  (lane-dense contraction dim)
PACKED_N = PACK * NUM_CLASSES        # 128              (lane-dense output dim)
TR_DEFAULT = 512                     # packed rows / tile  -> 32768 batch rows / tile


def seqnet_kernel(x_ref, w_ref, o_ref):
    # x_ref: (TR, 1920) packed activations (64 rows x 30 feats per super-row)
    # w_ref: (1920, 256) = [ block-diag W | block-diag W with classes swapped ]
    # o_ref: (TR, 128)   = log-probs, lanes interleaved (row, class) pairs
    zz = jnp.dot(x_ref[...], w_ref[...], preferred_element_type=jnp.float32)
    z = zz[:, :PACKED_N]      # z[r, 2q+c]  = logit(batch row 64*i+q, class c)
    zs = zz[:, PACKED_N:]     # zs[r, 2q+c] = logit(batch row 64*i+q, class 1-c)
    # Numerically stable 2-class log_softmax, element-wise (VPU + EUP only).
    m = jnp.maximum(z, zs)
    lse = m + jnp.log1p(jnp.exp(-jnp.abs(z - zs)))
    o_ref[...] = (z - lse).astype(o_ref.dtype)


def _expand_weight(w):
    """(2, 30) -> (1920, 256) block-diagonal [logits | class-swapped logits]."""
    eye = jnp.eye(PACK, dtype=w.dtype)                                   # (64, 64)
    w_big = jnp.einsum("qp,ck->qkpc", eye, w).reshape(PACKED_K, PACKED_N)
    w_swap = jnp.einsum("qp,ck->qkpc", eye, w[::-1]).reshape(PACKED_K, PACKED_N)
    return jnp.concatenate([w_big, w_swap], axis=1)                      # (1920, 256)


def _pick_tile_rows(rows):
    """Packed-row tile: multiple of 8 (sublanes) unless it is the full extent,
    and capped near rows/2 so multi-tile batches get >=2 parallel grid steps."""
    if rows <= 16:
        return rows                                  # one full-extent block
    half = -(-rows // 2)                             # ceil(rows / 2)
    tr = min(TR_DEFAULT, half)
    return max(8, (tr // 8) * 8)


def seqnet_forward(x, weight):
    """x: (..., INPUT_SIZE) float32 (bf16 also works; f32 MXU accumulation).
    weight: (NUM_CLASSES, INPUT_SIZE).  Returns (B, NUM_CLASSES) log-probs,
    matching F.log_softmax(nn.Linear(INPUT_SIZE, 2, bias=False)(x), dim=1)."""
    x2d = x.reshape(-1, INPUT_SIZE)                  # PyTorch: x.view(-1, INPUT_SIZE)
    b = x2d.shape[0]

    # Pad the batch to a multiple of PACK (zeros), then pack lane-dense.
    pad_rows = (-b) % PACK
    if pad_rows:
        x2d = jnp.pad(x2d, ((0, pad_rows), (0, 0)))
    rows = (b + pad_rows) // PACK
    packed = x2d.reshape(rows, PACKED_K)             # contiguous -> free reshape

    w_cat = _expand_weight(weight.astype(packed.dtype))

    tr = _pick_tile_rows(rows)
    grid = (pl.cdiv(rows, tr),)

    itemsize = jnp.dtype(packed.dtype).itemsize
    cost = pl.CostEstimate(
        flops=2 * rows * PACKED_K * (2 * PACKED_N),
        transcendentals=2 * rows * PACKED_N,                       # exp + log1p
        bytes_accessed=(rows * PACKED_K + PACKED_K * 2 * PACKED_N
                        + rows * PACKED_N) * itemsize,
    )

    out_pairs = pl.pallas_call(
        seqnet_kernel,
        out_shape=jax.ShapeDtypeStruct((rows, PACKED_N), packed.dtype),
        grid_spec=pltpu.PrefetchScalarGridSpec(
            num_scalar_prefetch=0,
            grid=grid,
            in_specs=[
                # Packed activations: fully lane-dense, new block per step.
                pl.BlockSpec((tr, PACKED_K), lambda i: (i, 0)),
                # Expanded weight: constant block index -> resident in VMEM.
                pl.BlockSpec((PACKED_K, 2 * PACKED_N), lambda i: (0, 0)),
            ],
            # Lane-dense output (128 lanes) that reshapes directly to (B, 2).
            out_specs=pl.BlockSpec((tr, PACKED_N), lambda i: (i, 0)),
        ),
        compiler_params=pltpu.CompilerParams(
            # Batch tiles are independent -> shard across TensorCores (v7x).
            dimension_semantics=("parallel",),
            # ~12 MiB budget at TR=512; raise above v5e's 16 MiB default scoped
            # limit (still well under v7x's 64 MiB physical VMEM).
            vmem_limit_bytes=48 << 20,
        ),
        cost_estimate=cost,
    )(packed, w_cat)

    # (rows, 128) row-major == (rows*64, 2); drop padded rows. No transpose.
    return out_pairs.reshape(rows * PACK, NUM_CLASSES)[:b]


def init_params(key):
    # nn.Linear default init: U(-1/sqrt(in_features), 1/sqrt(in_features)).
    bound = 1.0 / jnp.sqrt(jnp.float32(INPUT_SIZE))
    return jax.random.uniform(
        key, (NUM_CLASSES, INPUT_SIZE), dtype=jnp.float32,
        minval=-bound, maxval=bound)


def _reference(x2d, weight):
    z = x2d @ weight.T
    return z - jax.scipy.special.logsumexp(z, axis=1, keepdims=True)


if __name__ == "__main__":
    key = jax.random.PRNGKey(0)
    k_w, k_x1, k_x2 = jax.random.split(key, 3)

    weight = init_params(k_w)

    # Small case: batch not a multiple of 64 -> exercises pad + slice path.
    batch = 8
    x = jax.random.normal(k_x1, (batch, INPUT_SIZE), dtype=jnp.float32)
    out = jax.block_until_ready(seqnet_forward(x, weight))
    assert out.shape == (batch, NUM_CLASSES)
    assert jnp.allclose(out, _reference(x.reshape(-1, INPUT_SIZE), weight),
                        atol=1e-4, rtol=1e-4)

    # Medium case: multiple grid steps (parallel axis) + partial pack group.
    batch2 = 2000
    x2 = jax.random.normal(k_x2, (batch2, INPUT_SIZE), dtype=jnp.float32)
    out2 = jax.block_until_ready(seqnet_forward(x2, weight))
    assert out2.shape == (batch2, NUM_CLASSES)
    assert jnp.allclose(out2, _reference(x2, weight), atol=1e-4, rtol=1e-4)

    print("KERNEL_OK")
</pallas_src>

<mosaic_0001>
module attributes {stable_mosaic.version = 11 : i64} {
  func.func @seqnet_kernel(%arg0: i32, %arg1: memref<1x1920xf32, #tpu.memory_space<vmem>>, %arg2: memref<1920x256xf32, #tpu.memory_space<vmem>>, %arg3: memref<1x128xf32, #tpu.memory_space<vmem>>) attributes {dimension_semantics = [#tpu.dimension_semantics<parallel>], iteration_bounds = array<i64: 1>, scalar_prefetch = 0 : i64, scratch_operands = 0 : i64, tpu.core_type = #tpu.core_type<tc>, window_params = [{transform_indices = @transform_0, window_bounds = array<i64: 1, 1920>}, {pipeline_mode = #tpu.pipeline_mode<synchronous>, transform_indices = @transform_1, window_bounds = array<i64: 1920, 256>}, {transform_indices = @transform_2, window_bounds = array<i64: 1, 128>}]} {
    %c0 = arith.constant 0 : index
    %c0_0 = arith.constant 0 : index
    %0 = vector.load %arg1[%c0, %c0_0] : memref<1x1920xf32, #tpu.memory_space<vmem>>, vector<1x1920xf32>
    %c0_1 = arith.constant 0 : index
    %c0_2 = arith.constant 0 : index
    %1 = vector.load %arg2[%c0_1, %c0_2] : memref<1920x256xf32, #tpu.memory_space<vmem>>, vector<1920x256xf32>
    %cst = arith.constant dense<0.000000e+00> : vector<1x256xf32>
    %2 = tpu.matmul %0, %1, %cst {dimension_numbers = #tpu.dot_dimension_numbers<[1], [0], [0], [1], [0, 0, 1, 1], [], []>} : vector<1x1920xf32>, vector<1920x256xf32>, vector<1x256xf32> -> vector<1x256xf32>
    %3 = vector.extract_strided_slice %2 {offsets = [0, 0], sizes = [1, 128], strides = [1, 1]} : vector<1x256xf32> to vector<1x128xf32>
    %4 = vector.extract_strided_slice %2 {offsets = [0, 128], sizes = [1, 128], strides = [1, 1]} : vector<1x256xf32> to vector<1x128xf32>
    %5 = arith.maximumf %3, %4 : vector<1x128xf32>
    %6 = arith.subf %3, %4 : vector<1x128xf32>
    %7 = math.absf %6 : vector<1x128xf32>
    %cst_3 = arith.constant 0.000000e+00 : f32
    %8 = vector.broadcast %cst_3 : f32 to vector<1x128xf32>
    %9 = arith.subf %8, %7 : vector<1x128xf32>
    %10 = math.exp %9 : vector<1x128xf32>
    %11 = math.log1p %10 : vector<1x128xf32>
    %12 = arith.addf %5, %11 : vector<1x128xf32>
    %13 = arith.subf %3, %12 : vector<1x128xf32>
    %c0_4 = arith.constant 0 : index
    %c0_5 = arith.constant 0 : index
    %14 = vector.load %arg3[%c0_4, %c0_5] : memref<1x128xf32, #tpu.memory_space<vmem>>, vector<1x128xf32>
    tpu.vector_store %arg3[%c0_4, %c0_5], %13 {strides = array<i32>} : memref<1x128xf32, #tpu.memory_space<vmem>>, vector<1x128xf32>,
    return
  }
  func.func @transform_0(%arg0: i32) -> (i32, i32) {
    %c0_i32 = arith.constant 0 : i32
    %c0_i32_0 = arith.constant 0 : i32
    return %arg0, %c0_i32 : i32, i32
  }
  func.func @transform_1(%arg0: i32) -> (i32, i32) {
    %c0_i32 = arith.constant 0 : i32
    %c0_i32_0 = arith.constant 0 : i32
    %c0_i32_1 = arith.constant 0 : i32
    return %c0_i32, %c0_i32_0 : i32, i32
  }
  func.func @transform_2(%arg0: i32) -> (i32, i32) {
    %c0_i32 = arith.constant 0 : i32
    %c0_i32_0 = arith.constant 0 : i32
    return %arg0, %c0_i32 : i32, i32
  }
}

</mosaic_0001>

<llo_original>
// kernel: tpu_custom_call.1
$region0: #{tpu_custom_call.1}
  #allocation0 [shape = 'u32[]', space=smem, size = 0x4, offset = 0x4, fixed_abs, tag = 'smem constant byte address 0x4 - core index']
  #allocation1 [shape = 'u32[144,128]{1,0:T(1,128)}', space=vmem, size = 0x12000, scoped, tag = 'internal scratch']
  %s0 = inlined_call_operand.hbm [shape: f32[1,1920], index: 0, kind: input, shape index: {}]
  %s1 = inlined_call_operand.hbm [shape: f32[1920,256], index: 1, kind: input, shape index: {}]
  %s2 = inlined_call_operand.hbm [shape: f32[1,128], index: 2, kind: output, shape index: {}]
  %s3 = sld [smem:[#allocation0]]
  $region26: #{tpu_custom_call.1} parent=0
    _
  %s5 = ssub.s32 1, %s3
  %s6 = scalar_select 0, %s5, %s3
  $region1: #{tpu_custom_call.1} parent=0
    #allocation2 [shape = 'u8[7680]{0}', space=vmem, size = 0x2000, scoped, tag = 'input window, operand 0, single buffered']
    #allocation3 [shape = 's32[1]{0}', space=sflag, size = 0x4, scoped, tag = 'scoped memory for tpu_custom_call.1']
    #allocation4 [shape = 's32[1]{0}', space=sflag, size = 0x4, scoped, tag = 'scoped memory for tpu_custom_call.1']
    #allocation5 [shape = 'u8[1966080]{0}', space=vmem, size = 0x1e0000, scoped, tag = 'input window, operand 1, single buffered']
    #allocation6 [shape = 's32[1]{0}', space=sflag, size = 0x4, scoped, tag = 'scoped memory for tpu_custom_call.1']
    #allocation7 [shape = 'u8[512]{0}', space=vmem, size = 0x400, scoped, tag = 'output window, operand 0, single buffered']
    %7 = vsyncpa [#allocation3], 0
    %8 = vsyncpa [#allocation6], 0
    %9 = vsyncpa [#allocation4], 0
    // Predicated region
    $region2: #{tpu_custom_call.1} parent=1 // pred_check
      _
    $region3: #{tpu_custom_call.1} parent=1 // pred_check_branch
      %11 = sbr.rel (0) target = $region5
    $region4: #{tpu_custom_call.1} parent=1 // pred_region
      %s13 = ssub.s32 240, 240
      %14 = vsyncadd [#allocation3], %s13
      %s16 = sshll.u32 [#allocation2], 4
      %s17 = int_to_ptr.vmem [resolvable:$true] %s16
      %19 = dma.hbm_to_vmem [thread:$0]  %s0, 240, %s17, [#allocation3]
    $region5: #{tpu_custom_call.1} parent=1 // pred_fallthru
      _
    // Predicated region
    $region6: #{tpu_custom_call.1} parent=1 // pred_check
      _
    $region7: #{tpu_custom_call.1} parent=1 // pred_check_branch
      %21 = sbr.rel (0) target = $region9
    $region8: #{tpu_custom_call.1} parent=1 // pred_region
      %s23 = ssub.s32 61440, 61440
      %24 = vsyncadd [#allocation6], %s23
      %s25 = sshll.u32 [#allocation5], 4
      %s26 = int_to_ptr.vmem [resolvable:$true] %s25
      %31 = dma.hbm_to_vmem [thread:$0]  %s1, 61440, %s26, [#allocation6], 256, 256, 16
    $region9: #{tpu_custom_call.1} parent=1 // pred_fallthru
      _
    // Predicated region
    $region10: #{tpu_custom_call.1} parent=1 // pred_check
      _
    $region11: #{tpu_custom_call.1} parent=1 // pred_check_branch
      %33 = sbr.rel (0) target = $region13
    $region12: #{tpu_custom_call.1} parent=1 // pred_region
      %34 = dma.done [#allocation3], 240
    $region13: #{tpu_custom_call.1} parent=1 // pred_fallthru
      _
    // Predicated region
    $region14: #{tpu_custom_call.1} parent=1 // pred_check
      _
    $region15: #{tpu_custom_call.1} parent=1 // pred_check_branch
      %36 = sbr.rel (0) target = $region17
    $region16: #{tpu_custom_call.1} parent=1 // pred_region
      %37 = dma.done [#allocation6], 61440
    $region17: #{tpu_custom_call.1} parent=1 // pred_fallthru
      _
    %v38 = vld [vmem:[#allocation2] sm:$0xff]
    %v39 = vld [vmem:[#allocation2 + $0x8] sm:$0xff]
    %v40 = vld [vmem:[#allocation5] sm:$0xff]
    %v41 = vld [vmem:[#allocation5 + $0x8] sm:$0xff]
    %v42 = vld [vmem:[#allocation5 + $0x10] sm:$0xff]
    %v43 = vld [vmem:[#allocation5 + $0x18] sm:$0xff]
    %v44 = vld [vmem:[#allocation5 + $0x20] sm:$0xff]
    %v45 = vld [vmem:[#allocation5 + $0x28] sm:$0xff]
    %v46 = vld [vmem:[#allocation5 + $0x30] sm:$0xff]
    %v47 = vld [vmem:[#allocation5 + $0x38] sm:$0xff]
    %v48 = vld [vmem:[#allocation5 + $0x40] sm:$0xff]
    %v49 = vld [vmem:[#allocation5 + $0x48] sm:$0xff]
    %v50 = vld [vmem:[#allocation5 + $0x50] sm:$0xff]
    %v51 = vld [vmem:[#allocation5 + $0x58] sm:$0xff]
    %v52 = vld [vmem:[#allocation5 + $0x60] sm:$0xff]
    %v53 = vld [vmem:[#allocation5 + $0x68] sm:$0xff]
    %v54 = vld [vmem:[#allocation5 + $0x70] sm:$0xff]
    %v55 = vld [vmem:[#allocation5 + $0x78] sm:$0xff]
    %v56 = vld [vmem:[#allocation5 + $0x80] sm:$0xff]
    %v57 = vld [vmem:[#allocation5 + $0x88] sm:$0xff]
    %v58 = vld [vmem:[#allocation5 + $0x90] sm:$0xff]
    %v59 = vld [vmem:[#allocation5 + $0x98] sm:$0xff]
    %v60 = vld [vmem:[#allocation5 + $0xa0] sm:$0xff]
    %v61 = vld [vmem:[#allocation5 + $0xa8] sm:$0xff]
    %v62 = vld [vmem:[#allocation5 + $0xb0] sm:$0xff]
    %v63 = vld [vmem:[#allocation5 + $0xb8] sm:$0xff]
    %v64 = vld [vmem:[#allocation5 + $0xc0] sm:$0xff]
    %v65 = vld [vmem:[#allocation5 + $0xc8] sm:$0xff]
    %v66 = vld [vmem:[#allocation5 + $0xd0] sm:$0xff]
    %v67 = vld [vmem:[#allocation5 + $0xd8] sm:$0xff]
    %v68 = vld [vmem:[#allocation5 + $0xe0] sm:$0xff]
    %v69 = vld [vmem:[#allocation5 + $0xe8] sm:$0xff]
    %v70 = vld [vmem:[#allocation5 + $0xf0] sm:$0xff]
    %v71 = vld [vmem:[#allocation5 + $0xf8] sm:$0xff]
    %v72 = vld [vmem:[#allocation5 + $0x100] sm:$0xff]
    %v73 = vld [vmem:[#allocation5 + $0x108] sm:$0xff]
    %v74 = vld [vmem:[#allocation5 + $0x110] sm:$0xff]
    %v75 = vld [vmem:[#allocation5 + $0x118] sm:$0xff]
    %v76 = vld [vmem:[#allocation5 + $0x120] sm:$0xff]
    %v77 = vld [vmem:[#allocation5 + $0x128] sm:$0xff]
    %v78 = vld [vmem:[#allocation5 + $0x130] sm:$0xff]
    %v79 = vld [vmem:[#allocation5 + $0x138] sm:$0xff]
    %v80 = vld [vmem:[#allocation5 + $0x140] sm:$0xff]
    %v81 = vld [vmem:[#allocation5 + $0x148] sm:$0xff]
    %v82 = vld [vmem:[#allocation5 + $0x150] sm:$0xff]
    %v83 = vld [vmem:[#allocation5 + $0x158] sm:$0xff]
    %v84 = vld [vmem:[#allocation5 + $0x160] sm:$0xff]
    %v85 = vld [vmem:[#allocation5 + $0x168] sm:$0xff]
    %v86 = vld [vmem:[#allocation5 + $0x170] sm:$0xff]
    %v87 = vld [vmem:[#allocation5 + $0x178] sm:$0xff]
    %v88 = vld [vmem:[#allocation5 + $0x180] sm:$0xff]
    %v89 = vld [vmem:[#allocation5 + $0x188] sm:$0xff]
    %v90 = vld [vmem:[#allocation5 + $0x190] sm:$0xff]
    %v91 = vld [vmem:[#allocation5 + $0x198] sm:$0xff]
    %v92 = vld [vmem:[#allocation5 + $0x1a0] sm:$0xff]
    %v93 = vld [vmem:[#allocation5 + $0x1a8] sm:$0xff]
    %v94 = vld [vmem:[#allocation5 + $0x1b0] sm:$0xff]
    %v95 = vld [vmem:[#allocation5 + $0x1b8] sm:$0xff]
    %v96 = vld [vmem:[#allocation5 + $0x1c0] sm:$0xff]
    %v97 = vld [vmem:[#allocation5 + $0x1c8] sm:$0xff]
    %v98 = vld [vmem:[#allocation5 + $0x1d0] sm:$0xff]
    %v99 = vld [vmem:[#allocation5 + $0x1d8] sm:$0xff]
    %v100 = vld [vmem:[#allocation5 + $0x1e0] sm:$0xff]
    %v101 = vld [vmem:[#allocation5 + $0x1e8] sm:$0xff]
    %v102 = vld [vmem:[#allocation5 + $0x1f0] sm:$0xff]
    %v103 = vld [vmem:[#allocation5 + $0x1f8] sm:$0xff]
    %v104 = vld [vmem:[#allocation5 + $0x200] sm:$0xff]
    %v105 = vld [vmem:[#allocation5 + $0x208] sm:$0xff]
    %v106 = vld [vmem:[#allocation5 + $0x210] sm:$0xff]
    %v107 = vld [vmem:[#allocation5 + $0x218] sm:$0xff]
    %v108 = vld [vmem:[#allocation5 + $0x220] sm:$0xff]
    %v109 = vld [vmem:[#allocation5 + $0x228] sm:$0xff]
    %v110 = vld [vmem:[#allocation5 + $0x230] sm:$0xff]
    %v111 = vld [vmem:[#allocation5 + $0x238] sm:$0xff]
    %v112 = vld [vmem:[#allocation5 + $0x240] sm:$0xff]
    %v113 = vld [vmem:[#allocation5 + $0x248] sm:$0xff]
    %v114 = vld [vmem:[#allocation5 + $0x250] sm:$0xff]
    %v115 = vld [vmem:[#allocation5 + $0x258] sm:$0xff]
    %v116 = vld [vmem:[#allocation5 + $0x260] sm:$0xff]
    %v117 = vld [vmem:[#allocation5 + $0x268] sm:$0xff]
    %v118 = vld [vmem:[#allocation5 + $0x270] sm:$0xff]
    %v119 = vld [vmem:[#allocation5 + $0x278] sm:$0xff]
    %v120 = vld [vmem:[#allocation5 + $0x280] sm:$0xff]
    %v121 = vld [vmem:[#allocation5 + $0x288] sm:$0xff]
    %v122 = vld [vmem:[#allocation5 + $0x290] sm:$0xff]
    %v123 = vld [vmem:[#allocation5 + $0x298] sm:$0xff]
    %v124 = vld [vmem:[#allocation5 + $0x2a0] sm:$0xff]
    %v125 = vld [vmem:[#allocation5 + $0x2a8] sm:$0xff]
    %v126 = vld [vmem:[#allocation5 + $0x2b0] sm:$0xff]
    %v127 = vld [vmem:[#allocation5 + $0x2b8] sm:$0xff]
    %v128 = vld [vmem:[#allocation5 + $0x2c0] sm:$0xff]
    %v129 = vld [vmem:[#allocation5 + $0x2c8] sm:$0xff]
    %v130 = vld [vmem:[#allocation5 + $0x2d0] sm:$0xff]
    %v131 = vld [vmem:[#allocation5 + $0x2d8] sm:$0xff]
    %v132 = vld [vmem:[#allocation5 + $0x2e0] sm:$0xff]
    %v133 = vld [vmem:[#allocation5 + $0x2e8] sm:$0xff]
    %v134 = vld [vmem:[#allocation5 + $0x2f0] sm:$0xff]
    %v135 = vld [vmem:[#allocation5 + $0x2f8] sm:$0xff]
    %v136 = vld [vmem:[#allocation5 + $0x300] sm:$0xff]
    %v137 = vld [vmem:[#allocation5 + $0x308] sm:$0xff]
    %v138 = vld [vmem:[#allocation5 + $0x310] sm:$0xff]
    %v139 = vld [vmem:[#allocation5 + $0x318] sm:$0xff]
    %v140 = vld [vmem:[#allocation5 + $0x320] sm:$0xff]
    %v141 = vld [vmem:[#allocation5 + $0x328] sm:$0xff]
    %v142 = vld [vmem:[#allocation5 + $0x330] sm:$0xff]
    %v143 = vld [vmem:[#allocation5 + $0x338] sm:$0xff]
    %v144 = vld [vmem:[#allocation5 + $0x340] sm:$0xff]
    %v145 = vld [vmem:[#allocation5 + $0x348] sm:$0xff]
    %v146 = vld [vmem:[#allocation5 + $0x350] sm:$0xff]
    %v147 = vld [vmem:[#allocation5 + $0x358] sm:$0xff]
    %v148 = vld [vmem:[#allocation5 + $0x360] sm:$0xff]
    %v149 = vld [vmem:[#allocation5 + $0x368] sm:$0xff]
    %v150 = vld [vmem:[#allocation5 + $0x370] sm:$0xff]
    %v151 = vld [vmem:[#allocation5 + $0x378] sm:$0xff]
    %v152 = vld [vmem:[#allocation5 + $0x380] sm:$0xff]
    %v153 = vld [vmem:[#allocation5 + $0x388] sm:$0xff]
    %v154 = vld [vmem:[#allocation5 + $0x390] sm:$0xff]
    %v155 = vld [vmem:[#allocation5 + $0x398] sm:$0xff]
    %v156 = vld [vmem:[#allocation5 + $0x3a0] sm:$0xff]
    %v157 = vld [vmem:[#allocation5 + $0x3a8] sm:$0xff]
    %v158 = vld [vmem:[#allocation5 + $0x3b0] sm:$0xff]
    %v159 = vld [vmem:[#allocation5 + $0x3b8] sm:$0xff]
    %v160 = vld [vmem:[#allocation5 + $0x3c0] sm:$0xff]
    %v161 = vld [vmem:[#allocation5 + $0x3c8] sm:$0xff]
    %v162 = vld [vmem:[#allocation5 + $0x3d0] sm:$0xff]
    %v163 = vld [vmem:[#allocation5 + $0x3d8] sm:$0xff]
    %v164 = vld [vmem:[#allocation5 + $0x3e0] sm:$0xff]
    %v165 = vld [vmem:[#allocation5 + $0x3e8] sm:$0xff]
    %v166 = vld [vmem:[#allocation5 + $0x3f0] sm:$0xff]
    %v167 = vld [vmem:[#allocation5 + $0x3f8] sm:$0xff]
    %v168 = vld [vmem:[#allocation5 + $0x400] sm:$0xff]
    %v169 = vld [vmem:[#allocation5 + $0x408] sm:$0xff]
    %v170 = vld [vmem:[#allocation5 + $0x410] sm:$0xff]
    %v171 = vld [vmem:[#allocation5 + $0x418] sm:$0xff]
    %v172 = vld [vmem:[#allocation5 + $0x420] sm:$0xff]
    %v173 = vld [vmem:[#allocation5 + $0x428] sm:$0xff]
    %v174 = vld [vmem:[#allocation5 + $0x430] sm:$0xff]
    %v175 = vld [vmem:[#allocation5 + $0x438] sm:$0xff]
    %v176 = vld [vmem:[#allocation5 + $0x440] sm:$0xff]
    %v177 = vld [vmem:[#allocation5 + $0x448] sm:$0xff]
    %v178 = vld [vmem:[#allocation5 + $0x450] sm:$0xff]
    %v179 = vld [vmem:[#allocation5 + $0x458] sm:$0xff]
    %v180 = vld [vmem:[#allocation5 + $0x460] sm:$0xff]
    %v181 = vld [vmem:[#allocation5 + $0x468] sm:$0xff]
    %v182 = vld [vmem:[#allocation5 + $0x470] sm:$0xff]
    %v183 = vld [vmem:[#allocation5 + $0x478] sm:$0xff]
    %v184 = vld [vmem:[#allocation5 + $0x480] sm:$0xff]
    %v185 = vld [vmem:[#allocation5 + $0x488] sm:$0xff]
    %v186 = vld [vmem:[#allocation5 + $0x490] sm:$0xff]
    %v187 = vld [vmem:[#allocation5 + $0x498] sm:$0xff]
    %v188 = vld [vmem:[#allocation5 + $0x4a0] sm:$0xff]
    %v189 = vld [vmem:[#allocation5 + $0x4a8] sm:$0xff]
    %v190 = vld [vmem:[#allocation5 + $0x4b0] sm:$0xff]
    %v191 = vld [vmem:[#allocation5 + $0x4b8] sm:$0xff]
    %v192 = vld [vmem:[#allocation5 + $0x4c0] sm:$0xff]
    %v193 = vld [vmem:[#allocation5 + $0x4c8] sm:$0xff]
    %v194 = vld [vmem:[#allocation5 + $0x4d0] sm:$0xff]
    %v195 = vld [vmem:[#allocation5 + $0x4d8] sm:$0xff]
    %v196 = vld [vmem:[#allocation5 + $0x4e0] sm:$0xff]
    %v197 = vld [vmem:[#allocation5 + $0x4e8] sm:$0xff]
    %v198 = vld [vmem:[#allocation5 + $0x4f0] sm:$0xff]
    %v199 = vld [vmem:[#allocation5 + $0x4f8] sm:$0xff]
    %v200 = vld [vmem:[#allocation5 + $0x500] sm:$0xff]
    %v201 = vld [vmem:[#allocation5 + $0x508] sm:$0xff]
    %v202 = vld [vmem:[#allocation5 + $0x510] sm:$0xff]
    %v203 = vld [vmem:[#allocation5 + $0x518] sm:$0xff]
    %v204 = vld [vmem:[#allocation5 + $0x520] sm:$0xff]
    %v205 = vld [vmem:[#allocation5 + $0x528] sm:$0xff]
    %v206 = vld [vmem:[#allocation5 + $0x530] sm:$0xff]
    %v207 = vld [vmem:[#allocation5 + $0x538] sm:$0xff]
    %v208 = vld [vmem:[#allocation5 + $0x540] sm:$0xff]
    %v209 = vld [vmem:[#allocation5 + $0x548] sm:$0xff]
    %v210 = vld [vmem:[#allocation5 + $0x550] sm:$0xff]
    %v211 = vld [vmem:[#allocation5 + $0x558] sm:$0xff]
    %v212 = vld [vmem:[#allocation5 + $0x560] sm:$0xff]
    %v213 = vld [vmem:[#allocation5 + $0x568] sm:$0xff]
    %v214 = vld [vmem:[#allocation5 + $0x570] sm:$0xff]
    %v215 = vld [vmem:[#allocation5 + $0x578] sm:$0xff]
    %v216 = vld [vmem:[#allocation5 + $0x580] sm:$0xff]
    %v217 = vld [vmem:[#allocation5 + $0x588] sm:$0xff]
    %v218 = vld [vmem:[#allocation5 + $0x590] sm:$0xff]
    %v219 = vld [vmem:[#allocation5 + $0x598] sm:$0xff]
    %v220 = vld [vmem:[#allocation5 + $0x5a0] sm:$0xff]
    %v221 = vld [vmem:[#allocation5 + $0x5a8] sm:$0xff]
    %v222 = vld [vmem:[#allocation5 + $0x5b0] sm:$0xff]
    %v223 = vld [vmem:[#allocation5 + $0x5b8] sm:$0xff]
    %v224 = vld [vmem:[#allocation5 + $0x5c0] sm:$0xff]
    %v225 = vld [vmem:[#allocation5 + $0x5c8] sm:$0xff]
    %v226 = vld [vmem:[#allocation5 + $0x5d0] sm:$0xff]
    %v227 = vld [vmem:[#allocation5 + $0x5d8] sm:$0xff]
    %v228 = vld [vmem:[#allocation5 + $0x5e0] sm:$0xff]
    %v229 = vld [vmem:[#allocation5 + $0x5e8] sm:$0xff]
    %v230 = vld [vmem:[#allocation5 + $0x5f0] sm:$0xff]
    %v231 = vld [vmem:[#allocation5 + $0x5f8] sm:$0xff]
    %v232 = vld [vmem:[#allocation5 + $0x600] sm:$0xff]
    %v233 = vld [vmem:[#allocation5 + $0x608] sm:$0xff]
    %v234 = vld [vmem:[#allocation5 + $0x610] sm:$0xff]
    %v235 = vld [vmem:[#allocation5 + $0x618] sm:$0xff]
    %v236 = vld [vmem:[#allocation5 + $0x620] sm:$0xff]
    %v237 = vld [vmem:[#allocation5 + $0x628] sm:$0xff]
    %v238 = vld [vmem:[#allocation5 + $0x630] sm:$0xff]
    %v239 = vld [vmem:[#allocation5 + $0x638] sm:$0xff]
    %v240 = vld [vmem:[#allocation5 + $0x640] sm:$0xff]
    %v241 = vld [vmem:[#allocation5 + $0x648] sm:$0xff]
    %v242 = vld [vmem:[#allocation5 + $0x650] sm:$0xff]
    %v243 = vld [vmem:[#allocation5 + $0x658] sm:$0xff]
    %v244 = vld [vmem:[#allocation5 + $0x660] sm:$0xff]
    %v245 = vld [vmem:[#allocation5 + $0x668] sm:$0xff]
    %v246 = vld [vmem:[#allocation5 + $0x670] sm:$0xff]
    %v247 = vld [vmem:[#allocation5 + $0x678] sm:$0xff]
    %v248 = vld [vmem:[#allocation5 + $0x680] sm:$0xff]
    %v249 = vld [vmem:[#allocation5 + $0x688] sm:$0xff]
    %v250 = vld [vmem:[#allocation5 + $0x690] sm:$0xff]
    %v251 = vld [vmem:[#allocation5 + $0x698] sm:$0xff]
    %v252 = vld [vmem:[#allocation5 + $0x6a0] sm:$0xff]
    %v253 = vld [vmem:[#allocation5 + $0x6a8] sm:$0xff]
    %v254 = vld [vmem:[#allocation5 + $0x6b0] sm:$0xff]
    %v255 = vld [vmem:[#allocation5 + $0x6b8] sm:$0xff]
    %v256 = vld [vmem:[#allocation5 + $0x6c0] sm:$0xff]
    %v257 = vld [vmem:[#allocation5 + $0x6c8] sm:$0xff]
    %v258 = vld [vmem:[#allocation5 + $0x6d0] sm:$0xff]
    %v259 = vld [vmem:[#allocation5 + $0x6d8] sm:$0xff]
    %v260 = vld [vmem:[#allocation5 + $0x6e0] sm:$0xff]
    %v261 = vld [vmem:[#allocation5 + $0x6e8] sm:$0xff]
    %v262 = vld [vmem:[#allocation5 + $0x6f0] sm:$0xff]
    %v263 = vld [vmem:[#allocation5 + $0x6f8] sm:$0xff]
    %v264 = vld [vmem:[#allocation5 + $0x700] sm:$0xff]
    %v265 = vld [vmem:[#allocation5 + $0x708] sm:$0xff]
    %v266 = vld [vmem:[#allocation5 + $0x710] sm:$0xff]
    %v267 = vld [vmem:[#allocation5 + $0x718] sm:$0xff]
    %v268 = vld [vmem:[#allocation5 + $0x720] sm:$0xff]
    %v269 = vld [vmem:[#allocation5 + $0x728] sm:$0xff]
    %v270 = vld [vmem:[#allocation5 + $0x730] sm:$0xff]
    %v271 = vld [vmem:[#allocation5 + $0x738] sm:$0xff]
    %v272 = vld [vmem:[#allocation5 + $0x740] sm:$0xff]
    %v273 = vld [vmem:[#allocation5 + $0x748] sm:$0xff]
    %v274 = vld [vmem:[#allocation5 + $0x750] sm:$0xff]
    %v275 = vld [vmem:[#allocation5 + $0x758] sm:$0xff]
    %v276 = vld [vmem:[#allocation5 + $0x760] sm:$0xff]
    %v277 = vld [vmem:[#allocation5 + $0x768] sm:$0xff]
    %v278 = vld [vmem:[#allocation5 + $0x770] sm:$0xff]
    %v279 = vld [vmem:[#allocation5 + $0x778] sm:$0xff]
    %v280 = vld [vmem:[#allocation5 + $0x780] sm:$0xff]
    %v281 = vld [vmem:[#allocation5 + $0x788] sm:$0xff]
    %v282 = vld [vmem:[#allocation5 + $0x790] sm:$0xff]
    %v283 = vld [vmem:[#allocation5 + $0x798] sm:$0xff]
    %v284 = vld [vmem:[#allocation5 + $0x7a0] sm:$0xff]
    %v285 = vld [vmem:[#allocation5 + $0x7a8] sm:$0xff]
    %v286 = vld [vmem:[#allocation5 + $0x7b0] sm:$0xff]
    %v287 = vld [vmem:[#allocation5 + $0x7b8] sm:$0xff]
    %v288 = vld [vmem:[#allocation5 + $0x7c0] sm:$0xff]
    %v289 = vld [vmem:[#allocation5 + $0x7c8] sm:$0xff]
    %v290 = vld [vmem:[#allocation5 + $0x7d0] sm:$0xff]
    %v291 = vld [vmem:[#allocation5 + $0x7d8] sm:$0xff]
    %v292 = vld [vmem:[#allocation5 + $0x7e0] sm:$0xff]
    %v293 = vld [vmem:[#allocation5 + $0x7e8] sm:$0xff]
    %v294 = vld [vmem:[#allocation5 + $0x7f0] sm:$0xff]
    %v295 = vld [vmem:[#allocation5 + $0x7f8] sm:$0xff]
    %v296 = vld [vmem:[#allocation5 + $0x800] sm:$0xff]
    %v297 = vld [vmem:[#allocation5 + $0x808] sm:$0xff]
    %v298 = vld [vmem:[#allocation5 + $0x810] sm:$0xff]
    %v299 = vld [vmem:[#allocation5 + $0x818] sm:$0xff]
    %v300 = vld [vmem:[#allocation5 + $0x820] sm:$0xff]
    %v301 = vld [vmem:[#allocation5 + $0x828] sm:$0xff]
    %v302 = vld [vmem:[#allocation5 + $0x830] sm:$0xff]
    %v303 = vld [vmem:[#allocation5 + $0x838] sm:$0xff]
    %v304 = vld [vmem:[#allocation5 + $0x840] sm:$0xff]
    %v305 = vld [vmem:[#allocation5 + $0x848] sm:$0xff]
    %v306 = vld [vmem:[#allocation5 + $0x850] sm:$0xff]
    %v307 = vld [vmem:[#allocation5 + $0x858] sm:$0xff]
    %v308 = vld [vmem:[#allocation5 + $0x860] sm:$0xff]
    %v309 = vld [vmem:[#allocation5 + $0x868] sm:$0xff]
    %v310 = vld [vmem:[#allocation5 + $0x870] sm:$0xff]
    %v311 = vld [vmem:[#allocation5 + $0x878] sm:$0xff]
    %v312 = vld [vmem:[#allocation5 + $0x880] sm:$0xff]
    %v313 = vld [vmem:[#allocation5 + $0x888] sm:$0xff]
    %v314 = vld [vmem:[#allocation5 + $0x890] sm:$0xff]
    %v315 = vld [vmem:[#allocation5 + $0x898] sm:$0xff]
    %v316 = vld [vmem:[#allocation5 + $0x8a0] sm:$0xff]
    %v317 = vld [vmem:[#allocation5 + $0x8a8] sm:$0xff]
    %v318 = vld [vmem:[#allocation5 + $0x8b0] sm:$0xff]
    %v319 = vld [vmem:[#allocation5 + $0x8b8] sm:$0xff]
    %v320 = vld [vmem:[#allocation5 + $0x8c0] sm:$0xff]
    %v321 = vld [vmem:[#allocation5 + $0x8c8] sm:$0xff]
    %v322 = vld [vmem:[#allocation5 + $0x8d0] sm:$0xff]
    %v323 = vld [vmem:[#allocation5 + $0x8d8] sm:$0xff]
    %v324 = vld [vmem:[#allocation5 + $0x8e0] sm:$0xff]
    %v325 = vld [vmem:[#allocation5 + $0x8e8] sm:$0xff]
    %v326 = vld [vmem:[#allocation5 + $0x8f0] sm:$0xff]
    %v327 = vld [vmem:[#allocation5 + $0x8f8] sm:$0xff]
    %v328 = vld [vmem:[#allocation5 + $0x900] sm:$0xff]
    %v329 = vld [vmem:[#allocation5 + $0x908] sm:$0xff]
    %v330 = vld [vmem:[#allocation5 + $0x910] sm:$0xff]
    %v331 = vld [vmem:[#allocation5 + $0x918] sm:$0xff]
    %v332 = vld [vmem:[#allocation5 + $0x920] sm:$0xff]
    %v333 = vld [vmem:[#allocation5 + $0x928] sm:$0xff]
    %v334 = vld [vmem:[#allocation5 + $0x930] sm:$0xff]
    %v335 = vld [vmem:[#allocation5 + $0x938] sm:$0xff]
    %v336 = vld [vmem:[#allocation5 + $0x940] sm:$0xff]
    %v337 = vld [vmem:[#allocation5 + $0x948] sm:$0xff]
    %v338 = vld [vmem:[#allocation5 + $0x950] sm:$0xff]
    %v339 = vld [vmem:[#allocation5 + $0x958] sm:$0xff]
    %v340 = vld [vmem:[#allocation5 + $0x960] sm:$0xff]
    %v341 = vld [vmem:[#allocation5 + $0x968] sm:$0xff]
    %v342 = vld [vmem:[#allocation5 + $0x970] sm:$0xff]
    %v343 = vld [vmem:[#allocation5 + $0x978] sm:$0xff]
    %v344 = vld [vmem:[#allocation5 + $0x980] sm:$0xff]
    %v345 = vld [vmem:[#allocation5 + $0x988] sm:$0xff]
    %v346 = vld [vmem:[#allocation5 + $0x990] sm:$0xff]
    %v347 = vld [vmem:[#allocation5 + $0x998] sm:$0xff]
    %v348 = vld [vmem:[#allocation5 + $0x9a0] sm:$0xff]
    %v349 = vld [vmem:[#allocation5 + $0x9a8] sm:$0xff]
    %v350 = vld [vmem:[#allocation5 + $0x9b0] sm:$0xff]
    %v351 = vld [vmem:[#allocation5 + $0x9b8] sm:$0xff]
    %v352 = vld [vmem:[#allocation5 + $0x9c0] sm:$0xff]
    %v353 = vld [vmem:[#allocation5 + $0x9c8] sm:$0xff]
    %v354 = vld [vmem:[#allocation5 + $0x9d0] sm:$0xff]
    %v355 = vld [vmem:[#allocation5 + $0x9d8] sm:$0xff]
    %v356 = vld [vmem:[#allocation5 + $0x9e0] sm:$0xff]
    %v357 = vld [vmem:[#allocation5 + $0x9e8] sm:$0xff]
    %v358 = vld [vmem:[#allocation5 + $0x9f0] sm:$0xff]
    %v359 = vld [vmem:[#allocation5 + $0x9f8] sm:$0xff]
    %v360 = vld [vmem:[#allocation5 + $0xa00] sm:$0xff]
    %v361 = vld [vmem:[#allocation5 + $0xa08] sm:$0xff]
    %v362 = vld [vmem:[#allocation5 + $0xa10] sm:$0xff]
    %v363 = vld [vmem:[#allocation5 + $0xa18] sm:$0xff]
    %v364 = vld [vmem:[#allocation5 + $0xa20] sm:$0xff]
    %v365 = vld [vmem:[#allocation5 + $0xa28] sm:$0xff]
    %v366 = vld [vmem:[#allocation5 + $0xa30] sm:$0xff]
    %v367 = vld [vmem:[#allocation5 + $0xa38] sm:$0xff]
    %v368 = vld [vmem:[#allocation5 + $0xa40] sm:$0xff]
    %v369 = vld [vmem:[#allocation5 + $0xa48] sm:$0xff]
    %v370 = vld [vmem:[#allocation5 + $0xa50] sm:$0xff]
    %v371 = vld [vmem:[#allocation5 + $0xa58] sm:$0xff]
    %v372 = vld [vmem:[#allocation5 + $0xa60] sm:$0xff]
    %v373 = vld [vmem:[#allocation5 + $0xa68] sm:$0xff]
    %v374 = vld [vmem:[#allocation5 + $0xa70] sm:$0xff]
    %v375 = vld [vmem:[#allocation5 + $0xa78] sm:$0xff]
    %v376 = vld [vmem:[#allocation5 + $0xa80] sm:$0xff]
    %v377 = vld [vmem:[#allocation5 + $0xa88] sm:$0xff]
    %v378 = vld [vmem:[#allocation5 + $0xa90] sm:$0xff]
    %v379 = vld [vmem:[#allocation5 + $0xa98] sm:$0xff]
    %v380 = vld [vmem:[#allocation5 + $0xaa0] sm:$0xff]
    %v381 = vld [vmem:[#allocation5 + $0xaa8] sm:$0xff]
    %v382 = vld [vmem:[#allocation5 + $0xab0] sm:$0xff]
    %v383 = vld [vmem:[#allocation5 + $0xab8] sm:$0xff]
    %v384 = vld [vmem:[#allocation5 + $0xac0] sm:$0xff]
    %v385 = vld [vmem:[#allocation5 + $0xac8] sm:$0xff]
    %v386 = vld [vmem:[#allocation5 + $0xad0] sm:$0xff]
    %v387 = vld [vmem:[#allocation5 + $0xad8] sm:$0xff]
    %v388 = vld [vmem:[#allocation5 + $0xae0] sm:$0xff]
    %v389 = vld [vmem:[#allocation5 + $0xae8] sm:$0xff]
    %v390 = vld [vmem:[#allocation5 + $0xaf0] sm:$0xff]
    %v391 = vld [vmem:[#allocation5 + $0xaf8] sm:$0xff]
    %v392 = vld [vmem:[#allocation5 + $0xb00] sm:$0xff]
    %v393 = vld [vmem:[#allocation5 + $0xb08] sm:$0xff]
    %v394 = vld [vmem:[#allocation5 + $0xb10] sm:$0xff]
    %v395 = vld [vmem:[#allocation5 + $0xb18] sm:$0xff]
    %v396 = vld [vmem:[#allocation5 + $0xb20] sm:$0xff]
    %v397 = vld [vmem:[#allocation5 + $0xb28] sm:$0xff]
    %v398 = vld [vmem:[#allocation5 + $0xb30] sm:$0xff]
    %v399 = vld [vmem:[#allocation5 + $0xb38] sm:$0xff]
    %v400 = vld [vmem:[#allocation5 + $0xb40] sm:$0xff]
    %v401 = vld [vmem:[#allocation5 + $0xb48] sm:$0xff]
    %v402 = vld [vmem:[#allocation5 + $0xb50] sm:$0xff]
    %v403 = vld [vmem:[#allocation5 + $0xb58] sm:$0xff]
    %v404 = vld [vmem:[#allocation5 + $0xb60] sm:$0xff]
    %v405 = vld [vmem:[#allocation5 + $0xb68] sm:$0xff]
    %v406 = vld [vmem:[#allocation5 + $0xb70] sm:$0xff]
    %v407 = vld [vmem:[#allocation5 + $0xb78] sm:$0xff]
    %v408 = vld [vmem:[#allocation5 + $0xb80] sm:$0xff]
    %v409 = vld [vmem:[#allocation5 + $0xb88] sm:$0xff]
    %v410 = vld [vmem:[#allocation5 + $0xb90] sm:$0xff]
    %v411 = vld [vmem:[#allocation5 + $0xb98] sm:$0xff]
    %v412 = vld [vmem:[#allocation5 + $0xba0] sm:$0xff]
    %v413 = vld [vmem:[#allocation5 + $0xba8] sm:$0xff]
    %v414 = vld [vmem:[#allocation5 + $0xbb0] sm:$0xff]
    %v415 = vld [vmem:[#allocation5 + $0xbb8] sm:$0xff]
    %v416 = vld [vmem:[#allocation5 + $0xbc0] sm:$0xff]
    %v417 = vld [vmem:[#allocation5 + $0xbc8] sm:$0xff]
    %v418 = vld [vmem:[#allocation5 + $0xbd0] sm:$0xff]
    %v419 = vld [vmem:[#allocation5 + $0xbd8] sm:$0xff]
    %v420 = vld [vmem:[#allocation5 + $0xbe0] sm:$0xff]
    %v421 = vld [vmem:[#allocation5 + $0xbe8] sm:$0xff]
    %v422 = vld [vmem:[#allocation5 + $0xbf0] sm:$0xff]
    %v423 = vld [vmem:[#allocation5 + $0xbf8] sm:$0xff]
    %v424 = vld [vmem:[#allocation5 + $0xc00] sm:$0xff]
    %v425 = vld [vmem:[#allocation5 + $0xc08] sm:$0xff]
    %v426 = vld [vmem:[#allocation5 + $0xc10] sm:$0xff]
    %v427 = vld [vmem:[#allocation5 + $0xc18] sm:$0xff]
    %v428 = vld [vmem:[#allocation5 + $0xc20] sm:$0xff]
    %v429 = vld [vmem:[#allocation5 + $0xc28] sm:$0xff]
    %v430 = vld [vmem:[#allocation5 + $0xc30] sm:$0xff]
    %v431 = vld [vmem:[#allocation5 + $0xc38] sm:$0xff]
    %v432 = vld [vmem:[#allocation5 + $0xc40] sm:$0xff]
    %v433 = vld [vmem:[#allocation5 + $0xc48] sm:$0xff]
    %v434 = vld [vmem:[#allocation5 + $0xc50] sm:$0xff]
    %v435 = vld [vmem:[#allocation5 + $0xc58] sm:$0xff]
    %v436 = vld [vmem:[#allocation5 + $0xc60] sm:$0xff]
    %v437 = vld [vmem:[#allocation5 + $0xc68] sm:$0xff]
    %v438 = vld [vmem:[#allocation5 + $0xc70] sm:$0xff]
    %v439 = vld [vmem:[#allocation5 + $0xc78] sm:$0xff]
    %v440 = vld [vmem:[#allocation5 + $0xc80] sm:$0xff]
    %v441 = vld [vmem:[#allocation5 + $0xc88] sm:$0xff]
    %v442 = vld [vmem:[#allocation5 + $0xc90] sm:$0xff]
    %v443 = vld [vmem:[#allocation5 + $0xc98] sm:$0xff]
    %v444 = vld [vmem:[#allocation5 + $0xca0] sm:$0xff]
    %v445 = vld [vmem:[#allocation5 + $0xca8] sm:$0xff]
    %v446 = vld [vmem:[#allocation5 + $0xcb0] sm:$0xff]
    %v447 = vld [vmem:[#allocation5 + $0xcb8] sm:$0xff]
    %v448 = vld [vmem:[#allocation5 + $0xcc0] sm:$0xff]
    %v449 = vld [vmem:[#allocation5 + $0xcc8] sm:$0xff]
    %v450 = vld [vmem:[#allocation5 + $0xcd0] sm:$0xff]
    %v451 = vld [vmem:[#allocation5 + $0xcd8] sm:$0xff]
    %v452 = vld [vmem:[#allocation5 + $0xce0] sm:$0xff]
    %v453 = vld [vmem:[#allocation5 + $0xce8] sm:$0xff]
    %v454 = vld [vmem:[#allocation5 + $0xcf0] sm:$0xff]
    %v455 = vld [vmem:[#allocation5 + $0xcf8] sm:$0xff]
    %v456 = vld [vmem:[#allocation5 + $0xd00] sm:$0xff]
    %v457 = vld [vmem:[#allocation5 + $0xd08] sm:$0xff]
    %v458 = vld [vmem:[#allocation5 + $0xd10] sm:$0xff]
    %v459 = vld [vmem:[#allocation5 + $0xd18] sm:$0xff]
    %v460 = vld [vmem:[#allocation5 + $0xd20] sm:$0xff]
    %v461 = vld [vmem:[#allocation5 + $0xd28] sm:$0xff]
    %v462 = vld [vmem:[#allocation5 + $0xd30] sm:$0xff]
    %v463 = vld [vmem:[#allocation5 + $0xd38] sm:$0xff]
    %v464 = vld [vmem:[#allocation5 + $0xd40] sm:$0xff]
    %v465 = vld [vmem:[#allocation5 + $0xd48] sm:$0xff]
    %v466 = vld [vmem:[#allocation5 + $0xd50] sm:$0xff]
    %v467 = vld [vmem:[#allocation5 + $0xd58] sm:$0xff]
    %v468 = vld [vmem:[#allocation5 + $0xd60] sm:$0xff]
    %v469 = vld [vmem:[#allocation5 + $0xd68] sm:$0xff]
    %v470 = vld [vmem:[#allocation5 + $0xd70] sm:$0xff]
    %v471 = vld [vmem:[#allocation5 + $0xd78] sm:$0xff]
    %v472 = vld [vmem:[#allocation5 + $0xd80] sm:$0xff]
    %v473 = vld [vmem:[#allocation5 + $0xd88] sm:$0xff]
    %v474 = vld [vmem:[#allocation5 + $0xd90] sm:$0xff]
    %v475 = vld [vmem:[#allocation5 + $0xd98] sm:$0xff]
    %v476 = vld [vmem:[#allocation5 + $0xda0] sm:$0xff]
    %v477 = vld [vmem:[#allocation5 + $0xda8] sm:$0xff]
    %v478 = vld [vmem:[#allocation5 + $0xdb0] sm:$0xff]
    %v479 = vld [vmem:[#allocation5 + $0xdb8] sm:$0xff]
    %v480 = vld [vmem:[#allocation5 + $0xdc0] sm:$0xff]
    %v481 = vld [vmem:[#allocation5 + $0xdc8] sm:$0xff]
    %v482 = vld [vmem:[#allocation5 + $0xdd0] sm:$0xff]
    %v483 = vld [vmem:[#allocation5 + $0xdd8] sm:$0xff]
    %v484 = vld [vmem:[#allocation5 + $0xde0] sm:$0xff]
    %v485 = vld [vmem:[#allocation5 + $0xde8] sm:$0xff]
    %v486 = vld [vmem:[#allocation5 + $0xdf0] sm:$0xff]
    %v487 = vld [vmem:[#allocation5 + $0xdf8] sm:$0xff]
    %v488 = vld [vmem:[#allocation5 + $0xe00] sm:$0xff]
    %v489 = vld [vmem:[#allocation5 + $0xe08] sm:$0xff]
    %v490 = vld [vmem:[#allocation5 + $0xe10] sm:$0xff]
    %v491 = vld [vmem:[#allocation5 + $0xe18] sm:$0xff]
    %v492 = vld [vmem:[#allocation5 + $0xe20] sm:$0xff]
    %v493 = vld [vmem:[#allocation5 + $0xe28] sm:$0xff]
    %v494 = vld [vmem:[#allocation5 + $0xe30] sm:$0xff]
    %v495 = vld [vmem:[#allocation5 + $0xe38] sm:$0xff]
    %v496 = vld [vmem:[#allocation5 + $0xe40] sm:$0xff]
    %v497 = vld [vmem:[#allocation5 + $0xe48] sm:$0xff]
    %v498 = vld [vmem:[#allocation5 + $0xe50] sm:$0xff]
    %v499 = vld [vmem:[#allocation5 + $0xe58] sm:$0xff]
    %v500 = vld [vmem:[#allocation5 + $0xe60] sm:$0xff]
    %v501 = vld [vmem:[#allocation5 + $0xe68] sm:$0xff]
    %v502 = vld [vmem:[#allocation5 + $0xe70] sm:$0xff]
    %v503 = vld [vmem:[#allocation5 + $0xe78] sm:$0xff]
    %v504 = vld [vmem:[#allocation5 + $0xe80] sm:$0xff]
    %v505 = vld [vmem:[#allocation5 + $0xe88] sm:$0xff]
    %v506 = vld [vmem:[#allocation5 + $0xe90] sm:$0xff]
    %v507 = vld [vmem:[#allocation5 + $0xe98] sm:$0xff]
    %v508 = vld [vmem:[#allocation5 + $0xea0] sm:$0xff]
    %v509 = vld [vmem:[#allocation5 + $0xea8] sm:$0xff]
    %v510 = vld [vmem:[#allocation5 + $0xeb0] sm:$0xff]
    %v511 = vld [vmem:[#allocation5 + $0xeb8] sm:$0xff]
    %v512 = vld [vmem:[#allocation5 + $0xec0] sm:$0xff]
    %v513 = vld [vmem:[#allocation5 + $0xec8] sm:$0xff]
    %v514 = vld [vmem:[#allocation5 + $0xed0] sm:$0xff]
    %v515 = vld [vmem:[#allocation5 + $0xed8] sm:$0xff]
    %v516 = vld [vmem:[#allocation5 + $0xee0] sm:$0xff]
    %v517 = vld [vmem:[#allocation5 + $0xee8] sm:$0xff]
    %v518 = vld [vmem:[#allocation5 + $0xef0] sm:$0xff]
    %v519 = vld [vmem:[#allocation5 + $0xef8] sm:$0xff]
    %v522 = vlaneseq
    %v523 = vshrl.u32 %v522, 7
    %v524 = vsub.s32 0, %v523
    %v525 = vrot.slane %v38, %v524
    %v526 = vlaneseq
    %v527 = vshrl.u32 %v526, 7
    %v528 = vsub.s32 1, %v527
    %v529 = vrot.slane %v38, %v528
    %v530 = vlaneseq
    %v531 = vshrl.u32 %v530, 7
    %v532 = vsub.s32 2, %v531
    %v533 = vrot.slane %v38, %v532
    %v534 = vlaneseq
    %v535 = vshrl.u32 %v534, 7
    %v536 = vsub.s32 3, %v535
    %v537 = vrot.slane %v38, %v536
    %v538 = vlaneseq
    %v539 = vshrl.u32 %v538, 7
    %v540 = vsub.s32 4, %v539
    %v541 = vrot.slane %v38, %v540
    %v542 = vlaneseq
    %v543 = vshrl.u32 %v542, 7
    %v544 = vsub.s32 5, %v543
    %v545 = vrot.slane %v38, %v544
    %v546 = vlaneseq
    %v547 = vshrl.u32 %v546, 7
    %v548 = vsub.s32 6, %v547
    %v549 = vrot.slane %v38, %v548
    %v550 = vlaneseq
    %v551 = vshrl.u32 %v550, 7
    %v552 = vsub.s32 7, %v551
    %v553 = vrot.slane %v38, %v552
    %v554 = vlaneseq
    %v555 = vshrl.u32 %v554, 7
    %v556 = vsub.s32 0, %v555
    %v557 = vrot.slane %v39, %v556
    %v558 = vlaneseq
    %v559 = vshrl.u32 %v558, 7
    %v560 = vsub.s32 1, %v559
    %v561 = vrot.slane %v39, %v560
    %v562 = vlaneseq
    %v563 = vshrl.u32 %v562, 7
    %v564 = vsub.s32 2, %v563
    %v565 = vrot.slane %v39, %v564
    %v566 = vlaneseq
    %v567 = vshrl.u32 %v566, 7
    %v568 = vsub.s32 3, %v567
    %v569 = vrot.slane %v39, %v568
    %v570 = vlaneseq
    %v571 = vshrl.u32 %v570, 7
    %v572 = vsub.s32 4, %v571
    %v573 = vrot.slane %v39, %v572
    %v574 = vlaneseq
    %v575 = vshrl.u32 %v574, 7
    %v576 = vsub.s32 5, %v575
    %v577 = vrot.slane %v39, %v576
    %v578 = vlaneseq
    %v579 = vshrl.u32 %v578, 7
    %v580 = vsub.s32 6, %v579
    %v581 = vrot.slane %v39, %v580
    %597 = vmatprep.subr.mxu0 %v71
    %598 = vmatpush1.msra.mxu0 %v70
    %599 = vmatprep.subr.mxu0 %v69
    %600 = vmatpush1.msra.mxu0 %v68
    %601 = vmatprep.subr.mxu0 %v67
    %602 = vmatpush1.msra.mxu0 %v66
    %603 = vmatprep.subr.mxu0 %v65
    %604 = vmatpush1.msra.mxu0 %v64
    %605 = vmatprep.subr.mxu0 %v63
    %606 = vmatpush1.msra.mxu0 %v62
    %607 = vmatprep.subr.mxu0 %v61
    %608 = vmatpush1.msra.mxu0 %v60
    %609 = vmatprep.subr.mxu0 %v59
    %610 = vmatpush1.msra.mxu0 %v58
    %611 = vmatprep.subr.mxu0 %v57
    %612 = vmatpush1.msra.mxu0 %v56
    %613 = vmatprep.subr.mxu0 %v55
    %614 = vmatpush1.msra.mxu0 %v54
    %615 = vmatprep.subr.mxu0 %v53
    %616 = vmatpush1.msra.mxu0 %v52
    %617 = vmatprep.subr.mxu0 %v51
    %618 = vmatpush1.msra.mxu0 %v50
    %619 = vmatprep.subr.mxu0 %v49
    %620 = vmatpush1.msra.mxu0 %v48
    %621 = vmatprep.subr.mxu0 %v47
    %622 = vmatpush1.msra.mxu0 %v46
    %623 = vmatprep.subr.mxu0 %v45
    %624 = vmatpush1.msra.mxu0 %v44
    %625 = vmatprep.subr.mxu0 %v43
    %626 = vmatpush1.msra.mxu0 %v42
    %627 = vmatprep.subr.mxu0 %v41
    %628 = vmatpush1.msra.mxu0 %v40
    %629 = vmatprep.subr.mxu0 %v103
    %630 = vmatpush2.msra.mxu0 %v102
    %631 = vmatprep.subr.mxu0 %v101
    %632 = vmatpush2.msra.mxu0 %v100
    %633 = vmatprep.subr.mxu0 %v99
    %634 = vmatpush2.msra.mxu0 %v98
    %635 = vmatprep.subr.mxu0 %v97
    %636 = vmatpush2.msra.mxu0 %v96
    %637 = vmatprep.subr.mxu0 %v95
    %638 = vmatpush2.msra.mxu0 %v94
    %639 = vmatprep.subr.mxu0 %v93
    %640 = vmatpush2.msra.mxu0 %v92
    %641 = vmatprep.subr.mxu0 %v91
    %642 = vmatpush2.msra.mxu0 %v90
    %643 = vmatprep.subr.mxu0 %v89
    %644 = vmatpush2.msra.mxu0 %v88
    %645 = vmatprep.subr.mxu0 %v87
    %646 = vmatpush2.msra.mxu0 %v86
    %647 = vmatprep.subr.mxu0 %v85
    %648 = vmatpush2.msra.mxu0 %v84
    %649 = vmatprep.subr.mxu0 %v83
    %650 = vmatpush2.msra.mxu0 %v82
    %651 = vmatprep.subr.mxu0 %v81
    %652 = vmatpush2.msra.mxu0 %v80
    %653 = vmatprep.subr.mxu0 %v79
    %654 = vmatpush2.msra.mxu0 %v78
    %655 = vmatprep.subr.mxu0 %v77
    %656 = vmatpush2.msra.mxu0 %v76
    %657 = vmatprep.subr.mxu0 %v75
    %658 = vmatpush2.msra.mxu0 %v74
    %659 = vmatprep.subr.mxu0 %v73
    %660 = vmatpush2.msra.mxu0 %v72
    %661 = vmatprep.mubr.f32.mxu0 %v529
    %662 = vmatmul.mubr.f32.gmra.mxu0 %v525
    %v663 = vpop.f32.mrf.mxu0
    %v664 = vadd.f32 0.0, %v663
    %v665 = vpop.f32.mrf.mxu0
    %v666 = vadd.f32 0.0, %v665
    %667 = vdwg.mxu0
    %668 = vmatprep.subr.mxu0 %v135
    %669 = vmatpush1.msra.mxu0 %v134
    %670 = vmatprep.subr.mxu0 %v133
    %671 = vmatpush1.msra.mxu0 %v132
    %672 = vmatprep.subr.mxu0 %v131
    %673 = vmatpush1.msra.mxu0 %v130
    %674 = vmatprep.subr.mxu0 %v129
    %675 = vmatpush1.msra.mxu0 %v128
    %676 = vmatprep.subr.mxu0 %v127
    %677 = vmatpush1.msra.mxu0 %v126
    %678 = vmatprep.subr.mxu0 %v125
    %679 = vmatpush1.msra.mxu0 %v124
    %680 = vmatprep.subr.mxu0 %v123
    %681 = vmatpush1.msra.mxu0 %v122
    %682 = vmatprep.subr.mxu0 %v121
    %683 = vmatpush1.msra.mxu0 %v120
    %684 = vmatprep.subr.mxu0 %v119
    %685 = vmatpush1.msra.mxu0 %v118
    %686 = vmatprep.subr.mxu0 %v117
    %687 = vmatpush1.msra.mxu0 %v116
    %688 = vmatprep.subr.mxu0 %v115
    %689 = vmatpush1.msra.mxu0 %v114
    %690 = vmatprep.subr.mxu0 %v113
    %691 = vmatpush1.msra.mxu0 %v112
    %692 = vmatprep.subr.mxu0 %v111
    %693 = vmatpush1.msra.mxu0 %v110
    %694 = vmatprep.subr.mxu0 %v109
    %695 = vmatpush1.msra.mxu0 %v108
    %696 = vmatprep.subr.mxu0 %v107
    %697 = vmatpush1.msra.mxu0 %v106
    %698 = vmatprep.subr.mxu0 %v105
    %699 = vmatpush1.msra.mxu0 %v104
    %700 = vmatprep.subr.mxu0 %v167
    %701 = vmatpush2.msra.mxu0 %v166
    %702 = vmatprep.subr.mxu0 %v165
    %703 = vmatpush2.msra.mxu0 %v164
    %704 = vmatprep.subr.mxu0 %v163
    %705 = vmatpush2.msra.mxu0 %v162
    %706 = vmatprep.subr.mxu0 %v161
    %707 = vmatpush2.msra.mxu0 %v160
    %708 = vmatprep.subr.mxu0 %v159
    %709 = vmatpush2.msra.mxu0 %v158
    %710 = vmatprep.subr.mxu0 %v157
    %711 = vmatpush2.msra.mxu0 %v156
    %712 = vmatprep.subr.mxu0 %v155
    %713 = vmatpush2.msra.mxu0 %v154
    %714 = vmatprep.subr.mxu0 %v153
    %715 = vmatpush2.msra.mxu0 %v152
    %716 = vmatprep.subr.mxu0 %v151
    %717 = vmatpush2.msra.mxu0 %v150
    %718 = vmatprep.subr.mxu0 %v149
    %719 = vmatpush2.msra.mxu0 %v148
    %720 = vmatprep.subr.mxu0 %v147
    %721 = vmatpush2.msra.mxu0 %v146
    %722 = vmatprep.subr.mxu0 %v145
    %723 = vmatpush2.msra.mxu0 %v144
    %724 = vmatprep.subr.mxu0 %v143
    %725 = vmatpush2.msra.mxu0 %v142
    %726 = vmatprep.subr.mxu0 %v141
    %727 = vmatpush2.msra.mxu0 %v140
    %728 = vmatprep.subr.mxu0 %v139
    %729 = vmatpush2.msra.mxu0 %v138
    %730 = vmatprep.subr.mxu0 %v137
    %731 = vmatpush2.msra.mxu0 %v136
    %732 = vmatprep.mubr.f32.mxu0 %v537
    %733 = vmatmul.mubr.f32.gmra.mxu0 %v533
    %v734 = vpop.f32.mrf.mxu0
    %v735 = vadd.f32 %v664, %v734
    %v736 = vpop.f32.mrf.mxu0
    %v737 = vadd.f32 %v666, %v736
    %738 = vdwg.mxu0
    %739 = vmatprep.subr.mxu0 %v199
    %740 = vmatpush1.msra.mxu0 %v198
    %741 = vmatprep.subr.mxu0 %v197
    %742 = vmatpush1.msra.mxu0 %v196
    %743 = vmatprep.subr.mxu0 %v195
    %744 = vmatpush1.msra.mxu0 %v194
    %745 = vmatprep.subr.mxu0 %v193
    %746 = vmatpush1.msra.mxu0 %v192
    %747 = vmatprep.subr.mxu0 %v191
    %748 = vmatpush1.msra.mxu0 %v190
    %749 = vmatprep.subr.mxu0 %v189
    %750 = vmatpush1.msra.mxu0 %v188
    %751 = vmatprep.subr.mxu0 %v187
    %752 = vmatpush1.msra.mxu0 %v186
    %753 = vmatprep.subr.mxu0 %v185
    %754 = vmatpush1.msra.mxu0 %v184
    %755 = vmatprep.subr.mxu0 %v183
    %756 = vmatpush1.msra.mxu0 %v182
    %757 = vmatprep.subr.mxu0 %v181
    %758 = vmatpush1.msra.mxu0 %v180
    %759 = vmatprep.subr.mxu0 %v179
    %760 = vmatpush1.msra.mxu0 %v178
    %761 = vmatprep.subr.mxu0 %v177
    %762 = vmatpush1.msra.mxu0 %v176
    %763 = vmatprep.subr.mxu0 %v175
    %764 = vmatpush1.msra.mxu0 %v174
    %765 = vmatprep.subr.mxu0 %v173
    %766 = vmatpush1.msra.mxu0 %v172
    %767 = vmatprep.subr.mxu0 %v171
    %768 = vmatpush1.msra.mxu0 %v170
    %769 = vmatprep.subr.mxu0 %v169
    %770 = vmatpush1.msra.mxu0 %v168
    %771 = vmatprep.subr.mxu0 %v231
    %772 = vmatpush2.msra.mxu0 %v230
    %773 = vmatprep.subr.mxu0 %v229
    %774 = vmatpush2.msra.mxu0 %v228
    %775 = vmatprep.subr.mxu0 %v227
    %776 = vmatpush2.msra.mxu0 %v226
    %777 = vmatprep.subr.mxu0 %v225
    %778 = vmatpush2.msra.mxu0 %v224
    %779 = vmatprep.subr.mxu0 %v223
    %780 = vmatpush2.msra.mxu0 %v222
    %781 = vmatprep.subr.mxu0 %v221
    %782 = vmatpush2.msra.mxu0 %v220
    %783 = vmatprep.subr.mxu0 %v219
    %784 = vmatpush2.msra.mxu0 %v218
    %785 = vmatprep.subr.mxu0 %v217
    %786 = vmatpush2.msra.mxu0 %v216
    %787 = vmatprep.subr.mxu0 %v215
    %788 = vmatpush2.msra.mxu0 %v214
    %789 = vmatprep.subr.mxu0 %v213
    %790 = vmatpush2.msra.mxu0 %v212
    %791 = vmatprep.subr.mxu0 %v211
    %792 = vmatpush2.msra.mxu0 %v210
    %793 = vmatprep.subr.mxu0 %v209
    %794 = vmatpush2.msra.mxu0 %v208
    %795 = vmatprep.subr.mxu0 %v207
    %796 = vmatpush2.msra.mxu0 %v206
    %797 = vmatprep.subr.mxu0 %v205
    %798 = vmatpush2.msra.mxu0 %v204
    %799 = vmatprep.subr.mxu0 %v203
    %800 = vmatpush2.msra.mxu0 %v202
    %801 = vmatprep.subr.mxu0 %v201
    %802 = vmatpush2.msra.mxu0 %v200
    %803 = vmatprep.mubr.f32.mxu0 %v545
    %804 = vmatmul.mubr.f32.gmra.mxu0 %v541
    %v805 = vpop.f32.mrf.mxu0
    %v806 = vadd.f32 %v735, %v805
    %v807 = vpop.f32.mrf.mxu0
    %v808 = vadd.f32 %v737, %v807
    %809 = vdwg.mxu0
    %810 = vmatprep.subr.mxu0 %v263
    %811 = vmatpush1.msra.mxu0 %v262
    %812 = vmatprep.subr.mxu0 %v261
    %813 = vmatpush1.msra.mxu0 %v260
    %814 = vmatprep.subr.mxu0 %v259
    %815 = vmatpush1.msra.mxu0 %v258
    %816 = vmatprep.subr.mxu0 %v257
    %817 = vmatpush1.msra.mxu0 %v256
    %818 = vmatprep.subr.mxu0 %v255
    %819 = vmatpush1.msra.mxu0 %v254
    %820 = vmatprep.subr.mxu0 %v253
    %821 = vmatpush1.msra.mxu0 %v252
    %822 = vmatprep.subr.mxu0 %v251
    %823 = vmatpush1.msra.mxu0 %v250
    %824 = vmatprep.subr.mxu0 %v249
    %825 = vmatpush1.msra.mxu0 %v248
    %826 = vmatprep.subr.mxu0 %v247
    %827 = vmatpush1.msra.mxu0 %v246
    %828 = vmatprep.subr.mxu0 %v245
    %829 = vmatpush1.msra.mxu0 %v244
    %830 = vmatprep.subr.mxu0 %v243
    %831 = vmatpush1.msra.mxu0 %v242
    %832 = vmatprep.subr.mxu0 %v241
    %833 = vmatpush1.msra.mxu0 %v240
    %834 = vmatprep.subr.mxu0 %v239
    %835 = vmatpush1.msra.mxu0 %v238
    %836 = vmatprep.subr.mxu0 %v237
    %837 = vmatpush1.msra.mxu0 %v236
    %838 = vmatprep.subr.mxu0 %v235
    %839 = vmatpush1.msra.mxu0 %v234
    %840 = vmatprep.subr.mxu0 %v233
    %841 = vmatpush1.msra.mxu0 %v232
    %842 = vmatprep.subr.mxu0 %v295
    %843 = vmatpush2.msra.mxu0 %v294
    %844 = vmatprep.subr.mxu0 %v293
    %845 = vmatpush2.msra.mxu0 %v292
    %846 = vmatprep.subr.mxu0 %v291
    %847 = vmatpush2.msra.mxu0 %v290
    %848 = vmatprep.subr.mxu0 %v289
    %849 = vmatpush2.msra.mxu0 %v288
    %850 = vmatprep.subr.mxu0 %v287
    %851 = vmatpush2.msra.mxu0 %v286
    %852 = vmatprep.subr.mxu0 %v285
    %853 = vmatpush2.msra.mxu0 %v284
    %854 = vmatprep.subr.mxu0 %v283
    %855 = vmatpush2.msra.mxu0 %v282
    %856 = vmatprep.subr.mxu0 %v281
    %857 = vmatpush2.msra.mxu0 %v280
    %858 = vmatprep.subr.mxu0 %v279
    %859 = vmatpush2.msra.mxu0 %v278
    %860 = vmatprep.subr.mxu0 %v277
    %861 = vmatpush2.msra.mxu0 %v276
    %862 = vmatprep.subr.mxu0 %v275
    %863 = vmatpush2.msra.mxu0 %v274
    %864 = vmatprep.subr.mxu0 %v273
    %865 = vmatpush2.msra.mxu0 %v272
    %866 = vmatprep.subr.mxu0 %v271
    %867 = vmatpush2.msra.mxu0 %v270
    %868 = vmatprep.subr.mxu0 %v269
    %869 = vmatpush2.msra.mxu0 %v268
    %870 = vmatprep.subr.mxu0 %v267
    %871 = vmatpush2.msra.mxu0 %v266
    %872 = vmatprep.subr.mxu0 %v265
    %873 = vmatpush2.msra.mxu0 %v264
    %874 = vmatprep.mubr.f32.mxu0 %v553
    %875 = vmatmul.mubr.f32.gmra.mxu0 %v549
    %v876 = vpop.f32.mrf.mxu0
    %v877 = vadd.f32 %v806, %v876
    %v878 = vpop.f32.mrf.mxu0
    %v879 = vadd.f32 %v808, %v878
    %880 = vdwg.mxu0
    %881 = vmatprep.subr.mxu0 %v327
    %882 = vmatpush1.msra.mxu0 %v326
    %883 = vmatprep.subr.mxu0 %v325
    %884 = vmatpush1.msra.mxu0 %v324
    %885 = vmatprep.subr.mxu0 %v323
    %886 = vmatpush1.msra.mxu0 %v322
    %887 = vmatprep.subr.mxu0 %v321
    %888 = vmatpush1.msra.mxu0 %v320
    %889 = vmatprep.subr.mxu0 %v319
    %890 = vmatpush1.msra.mxu0 %v318
    %891 = vmatprep.subr.mxu0 %v317
    %892 = vmatpush1.msra.mxu0 %v316
    %893 = vmatprep.subr.mxu0 %v315
    %894 = vmatpush1.msra.mxu0 %v314
    %895 = vmatprep.subr.mxu0 %v313
    %896 = vmatpush1.msra.mxu0 %v312
    %897 = vmatprep.subr.mxu0 %v311
    %898 = vmatpush1.msra.mxu0 %v310
    %899 = vmatprep.subr.mxu0 %v309
    %900 = vmatpush1.msra.mxu0 %v308
    %901 = vmatprep.subr.mxu0 %v307
    %902 = vmatpush1.msra.mxu0 %v306
    %903 = vmatprep.subr.mxu0 %v305
    %904 = vmatpush1.msra.mxu0 %v304
    %905 = vmatprep.subr.mxu0 %v303
    %906 = vmatpush1.msra.mxu0 %v302
    %907 = vmatprep.subr.mxu0 %v301
    %908 = vmatpush1.msra.mxu0 %v300
    %909 = vmatprep.subr.mxu0 %v299
    %910 = vmatpush1.msra.mxu0 %v298
    %911 = vmatprep.subr.mxu0 %v297
    %912 = vmatpush1.msra.mxu0 %v296
    %913 = vmatprep.subr.mxu0 %v359
    %914 = vmatpush2.msra.mxu0 %v358
    %915 = vmatprep.subr.mxu0 %v357
    %916 = vmatpush2.msra.mxu0 %v356
    %917 = vmatprep.subr.mxu0 %v355
    %918 = vmatpush2.msra.mxu0 %v354
    %919 = vmatprep.subr.mxu0 %v353
    %920 = vmatpush2.msra.mxu0 %v352
    %921 = vmatprep.subr.mxu0 %v351
    %922 = vmatpush2.msra.mxu0 %v350
    %923 = vmatprep.subr.mxu0 %v349
    %924 = vmatpush2.msra.mxu0 %v348
    %925 = vmatprep.subr.mxu0 %v347
    %926 = vmatpush2.msra.mxu0 %v346
    %927 = vmatprep.subr.mxu0 %v345
    %928 = vmatpush2.msra.mxu0 %v344
    %929 = vmatprep.subr.mxu0 %v343
    %930 = vmatpush2.msra.mxu0 %v342
    %931 = vmatprep.subr.mxu0 %v341
    %932 = vmatpush2.msra.mxu0 %v340
    %933 = vmatprep.subr.mxu0 %v339
    %934 = vmatpush2.msra.mxu0 %v338
    %935 = vmatprep.subr.mxu0 %v337
    %936 = vmatpush2.msra.mxu0 %v336
    %937 = vmatprep.subr.mxu0 %v335
    %938 = vmatpush2.msra.mxu0 %v334
    %939 = vmatprep.subr.mxu0 %v333
    %940 = vmatpush2.msra.mxu0 %v332
    %941 = vmatprep.subr.mxu0 %v331
    %942 = vmatpush2.msra.mxu0 %v330
    %943 = vmatprep.subr.mxu0 %v329
    %944 = vmatpush2.msra.mxu0 %v328
    %945 = vmatprep.mubr.f32.mxu0 %v561
    %946 = vmatmul.mubr.f32.gmra.mxu0 %v557
    %v947 = vpop.f32.mrf.mxu0
    %v948 = vadd.f32 %v877, %v947
    %v949 = vpop.f32.mrf.mxu0
    %v950 = vadd.f32 %v879, %v949
    %951 = vdwg.mxu0
    %952 = vmatprep.subr.mxu0 %v391
    %953 = vmatpush1.msra.mxu0 %v390
    %954 = vmatprep.subr.mxu0 %v389
    %955 = vmatpush1.msra.mxu0 %v388
    %956 = vmatprep.subr.mxu0 %v387
    %957 = vmatpush1.msra.mxu0 %v386
    %958 = vmatprep.subr.mxu0 %v385
    %959 = vmatpush1.msra.mxu0 %v384
    %960 = vmatprep.subr.mxu0 %v383
    %961 = vmatpush1.msra.mxu0 %v382
    %962 = vmatprep.subr.mxu0 %v381
    %963 = vmatpush1.msra.mxu0 %v380
    %964 = vmatprep.subr.mxu0 %v379
    %965 = vmatpush1.msra.mxu0 %v378
    %966 = vmatprep.subr.mxu0 %v377
    %967 = vmatpush1.msra.mxu0 %v376
    %968 = vmatprep.subr.mxu0 %v375
    %969 = vmatpush1.msra.mxu0 %v374
    %970 = vmatprep.subr.mxu0 %v373
    %971 = vmatpush1.msra.mxu0 %v372
    %972 = vmatprep.subr.mxu0 %v371
    %973 = vmatpush1.msra.mxu0 %v370
    %974 = vmatprep.subr.mxu0 %v369
    %975 = vmatpush1.msra.mxu0 %v368
    %976 = vmatprep.subr.mxu0 %v367
    %977 = vmatpush1.msra.mxu0 %v366
    %978 = vmatprep.subr.mxu0 %v365
    %979 = vmatpush1.msra.mxu0 %v364
    %980 = vmatprep.subr.mxu0 %v363
    %981 = vmatpush1.msra.mxu0 %v362
    %982 = vmatprep.subr.mxu0 %v361
    %983 = vmatpush1.msra.mxu0 %v360
    %984 = vmatprep.subr.mxu0 %v423
    %985 = vmatpush2.msra.mxu0 %v422
    %986 = vmatprep.subr.mxu0 %v421
    %987 = vmatpush2.msra.mxu0 %v420
    %988 = vmatprep.subr.mxu0 %v419
    %989 = vmatpush2.msra.mxu0 %v418
    %990 = vmatprep.subr.mxu0 %v417
    %991 = vmatpush2.msra.mxu0 %v416
    %992 = vmatprep.subr.mxu0 %v415
    %993 = vmatpush2.msra.mxu0 %v414
    %994 = vmatprep.subr.mxu0 %v413
    %995 = vmatpush2.msra.mxu0 %v412
    %996 = vmatprep.subr.mxu0 %v411
    %997 = vmatpush2.msra.mxu0 %v410
    %998 = vmatprep.subr.mxu0 %v409
    %999 = vmatpush2.msra.mxu0 %v408
    %1000 = vmatprep.subr.mxu0 %v407
    %1001 = vmatpush2.msra.mxu0 %v406
    %1002 = vmatprep.subr.mxu0 %v405
    %1003 = vmatpush2.msra.mxu0 %v404
    %1004 = vmatprep.subr.mxu0 %v403
    %1005 = vmatpush2.msra.mxu0 %v402
    %1006 = vmatprep.subr.mxu0 %v401
    %1007 = vmatpush2.msra.mxu0 %v400
    %1008 = vmatprep.subr.mxu0 %v399
    %1009 = vmatpush2.msra.mxu0 %v398
    %1010 = vmatprep.subr.mxu0 %v397
    %1011 = vmatpush2.msra.mxu0 %v396
    %1012 = vmatprep.subr.mxu0 %v395
    %1013 = vmatpush2.msra.mxu0 %v394
    %1014 = vmatprep.subr.mxu0 %v393
    %1015 = vmatpush2.msra.mxu0 %v392
    %1016 = vmatprep.mubr.f32.mxu0 %v569
    %1017 = vmatmul.mubr.f32.gmra.mxu0 %v565
    %v1018 = vpop.f32.mrf.mxu0
    %v1019 = vadd.f32 %v948, %v1018
    %v1020 = vpop.f32.mrf.mxu0
    %v1021 = vadd.f32 %v950, %v1020
    %1022 = vdwg.mxu0
    %1023 = vmatprep.subr.mxu0 %v455
    %1024 = vmatpush1.msra.mxu0 %v454
    %1025 = vmatprep.subr.mxu0 %v453
    %1026 = vmatpush1.msra.mxu0 %v452
    %1027 = vmatprep.subr.mxu0 %v451
    %1028 = vmatpush1.msra.mxu0 %v450
    %1029 = vmatprep.subr.mxu0 %v449
    %1030 = vmatpush1.msra.mxu0 %v448
    %1031 = vmatprep.subr.mxu0 %v447
    %1032 = vmatpush1.msra.mxu0 %v446
    %1033 = vmatprep.subr.mxu0 %v445
    %1034 = vmatpush1.msra.mxu0 %v444
    %1035 = vmatprep.subr.mxu0 %v443
    %1036 = vmatpush1.msra.mxu0 %v442
    %1037 = vmatprep.subr.mxu0 %v441
    %1038 = vmatpush1.msra.mxu0 %v440
    %1039 = vmatprep.subr.mxu0 %v439
    %1040 = vmatpush1.msra.mxu0 %v438
    %1041 = vmatprep.subr.mxu0 %v437
    %1042 = vmatpush1.msra.mxu0 %v436
    %1043 = vmatprep.subr.mxu0 %v435
    %1044 = vmatpush1.msra.mxu0 %v434
    %1045 = vmatprep.subr.mxu0 %v433
    %1046 = vmatpush1.msra.mxu0 %v432
    %1047 = vmatprep.subr.mxu0 %v431
    %1048 = vmatpush1.msra.mxu0 %v430
    %1049 = vmatprep.subr.mxu0 %v429
    %1050 = vmatpush1.msra.mxu0 %v428
    %1051 = vmatprep.subr.mxu0 %v427
    %1052 = vmatpush1.msra.mxu0 %v426
    %1053 = vmatprep.subr.mxu0 %v425
    %1054 = vmatpush1.msra.mxu0 %v424
    %1055 = vmatprep.subr.mxu0 %v487
    %1056 = vmatpush2.msra.mxu0 %v486
    %1057 = vmatprep.subr.mxu0 %v485
    %1058 = vmatpush2.msra.mxu0 %v484
    %1059 = vmatprep.subr.mxu0 %v483
    %1060 = vmatpush2.msra.mxu0 %v482
    %1061 = vmatprep.subr.mxu0 %v481
    %1062 = vmatpush2.msra.mxu0 %v480
    %1063 = vmatprep.subr.mxu0 %v479
    %1064 = vmatpush2.msra.mxu0 %v478
    %1065 = vmatprep.subr.mxu0 %v477
    %1066 = vmatpush2.msra.mxu0 %v476
    %1067 = vmatprep.subr.mxu0 %v475
    %1068 = vmatpush2.msra.mxu0 %v474
    %1069 = vmatprep.subr.mxu0 %v473
    %1070 = vmatpush2.msra.mxu0 %v472
    %1071 = vmatprep.subr.mxu0 %v471
    %1072 = vmatpush2.msra.mxu0 %v470
    %1073 = vmatprep.subr.mxu0 %v469
    %1074 = vmatpush2.msra.mxu0 %v468
    %1075 = vmatprep.subr.mxu0 %v467
    %1076 = vmatpush2.msra.mxu0 %v466
    %1077 = vmatprep.subr.mxu0 %v465
    %1078 = vmatpush2.msra.mxu0 %v464
    %1079 = vmatprep.subr.mxu0 %v463
    %1080 = vmatpush2.msra.mxu0 %v462
    %1081 = vmatprep.subr.mxu0 %v461
    %1082 = vmatpush2.msra.mxu0 %v460
    %1083 = vmatprep.subr.mxu0 %v459
    %1084 = vmatpush2.msra.mxu0 %v458
    %1085 = vmatprep.subr.mxu0 %v457
    %1086 = vmatpush2.msra.mxu0 %v456
    %1087 = vmatprep.mubr.f32.mxu0 %v577
    %1088 = vmatmul.mubr.f32.gmra.mxu0 %v573
    %v1089 = vpop.f32.mrf.mxu0
    %v1090 = vadd.f32 %v1019, %v1089
    %v1091 = vpop.f32.mrf.mxu0
    %v1092 = vadd.f32 %v1021, %v1091
    %1093 = vdwg.mxu0
    %1094 = vmatprep.subr.mxu0 %v519
    %1095 = vmatpush1.msra.mxu0 %v518
    %1096 = vmatprep.subr.mxu0 %v517
    %1097 = vmatpush1.msra.mxu0 %v516
    %1098 = vmatprep.subr.mxu0 %v515
    %1099 = vmatpush1.msra.mxu0 %v514
    %1100 = vmatprep.subr.mxu0 %v513
    %1101 = vmatpush1.msra.mxu0 %v512
    %1102 = vmatprep.subr.mxu0 %v511
    %1103 = vmatpush1.msra.mxu0 %v510
    %1104 = vmatprep.subr.mxu0 %v509
    %1105 = vmatpush1.msra.mxu0 %v508
    %1106 = vmatprep.subr.mxu0 %v507
    %1107 = vmatpush1.msra.mxu0 %v506
    %1108 = vmatprep.subr.mxu0 %v505
    %1109 = vmatpush1.msra.mxu0 %v504
    %1110 = vmatprep.subr.mxu0 %v503
    %1111 = vmatpush1.msra.mxu0 %v502
    %1112 = vmatprep.subr.mxu0 %v501
    %1113 = vmatpush1.msra.mxu0 %v500
    %1114 = vmatprep.subr.mxu0 %v499
    %1115 = vmatpush1.msra.mxu0 %v498
    %1116 = vmatprep.subr.mxu0 %v497
    %1117 = vmatpush1.msra.mxu0 %v496
    %1118 = vmatprep.subr.mxu0 %v495
    %1119 = vmatpush1.msra.mxu0 %v494
    %1120 = vmatprep.subr.mxu0 %v493
    %1121 = vmatpush1.msra.mxu0 %v492
    %1122 = vmatprep.subr.mxu0 %v491
    %1123 = vmatpush1.msra.mxu0 %v490
    %1124 = vmatprep.subr.mxu0 %v489
    %1125 = vmatpush1.msra.mxu0 %v488
    %1126 = vmatprep.subr.mxu0 0.0
    %1127 = vmatpush2.msra.mxu0 0.0
    %1128 = vmatprep.subr.mxu0 0.0
    %1129 = vmatpush2.msra.mxu0 0.0
    %1130 = vmatprep.subr.mxu0 0.0
    %1131 = vmatpush2.msra.mxu0 0.0
    %1132 = vmatprep.subr.mxu0 0.0
    %1133 = vmatpush2.msra.mxu0 0.0
    %1134 = vmatprep.subr.mxu0 0.0
    %1135 = vmatpush2.msra.mxu0 0.0
    %1136 = vmatprep.subr.mxu0 0.0
    %1137 = vmatpush2.msra.mxu0 0.0
    %1138 = vmatprep.subr.mxu0 0.0
    %1139 = vmatpush2.msra.mxu0 0.0
    %1140 = vmatprep.subr.mxu0 0.0
    %1141 = vmatpush2.msra.mxu0 0.0
    %1142 = vmatprep.subr.mxu0 0.0
    %1143 = vmatpush2.msra.mxu0 0.0
    %1144 = vmatprep.subr.mxu0 0.0
    %1145 = vmatpush2.msra.mxu0 0.0
    %1146 = vmatprep.subr.mxu0 0.0
    %1147 = vmatpush2.msra.mxu0 0.0
    %1148 = vmatprep.subr.mxu0 0.0
    %1149 = vmatpush2.msra.mxu0 0.0
    %1150 = vmatprep.subr.mxu0 0.0
    %1151 = vmatpush2.msra.mxu0 0.0
    %1152 = vmatprep.subr.mxu0 0.0
    %1153 = vmatpush2.msra.mxu0 0.0
    %1154 = vmatprep.subr.mxu0 0.0
    %1155 = vmatpush2.msra.mxu0 0.0
    %1156 = vmatprep.subr.mxu0 0.0
    %1157 = vmatpush2.msra.mxu0 0.0
    %1158 = vmatprep.mubr.f32.mxu0 0.0
    %1159 = vmatmul.mubr.f32.gmra.mxu0 %v581
    %v1160 = vpop.f32.mrf.mxu0
    %v1161 = vadd.f32 %v1090, %v1160
    %v1162 = vpop.f32.mrf.mxu0
    %v1163 = vadd.f32 %v1092, %v1162
    %1164 = vdwg.mxu0
    %v1165 = vmax.f32 %v1161, %v1163
    %v1166 = vsub.f32 %v1161, %v1163
    %v1167 = vand.u32 2147483647, %v1166
    %v1168 = vsub.f32 0.0, %v1167
    %v1169 = vmul.f32 %v1168, 1.442695
    %v1170 = vpow.pop %v1169
    %v1171 = vadd.f32 %v1170, 1.0
    %v1172 = vlog2.pop %v1171
    %v1173 = vmul.f32 %v1172, 0.6931472
    %v1174 = vmul.f32 -0.5, %v1170
    %v1175 = vadd.f32 %v1174, 1.0
    %v1176 = vmul.f32 %v1175, %v1170
    %v1177 = vand.u32 2147483647, %v1170
    %vm1178 = vcmp.lt.f32.partialorder %v1177, 0.0004427343
    %v1179 = vsel %vm1178, %v1176, %v1173
    %v1180 = vadd.f32 %v1165, %v1179
    %v1181 = vsub.f32 %v1161, %v1180
    %1182 = vst [vmem:[#allocation7] sm:$0x1] %v1181
    // Predicated region
    $region18: #{tpu_custom_call.1} parent=1 // pred_check
      _
    $region19: #{tpu_custom_call.1} parent=1 // pred_check_branch
      %1184 = sbr.rel (0) target = $region21
    $region20: #{tpu_custom_call.1} parent=1 // pred_region
      %s1186 = ssub.s32 16, 16
      %1187 = vsyncadd [#allocation4], %s1186
      %s1189 = sshll.u32 [#allocation7], 4
      %s1190 = int_to_ptr.vmem [resolvable:$true] %s1189
      %1192 = dma.vmem_to_hbm [thread:$0]  %s1190, 16, %s2, [#allocation4]
    $region21: #{tpu_custom_call.1} parent=1 // pred_fallthru
      _
    // Predicated region
    $region22: #{tpu_custom_call.1} parent=1 // pred_check
      _
    $region23: #{tpu_custom_call.1} parent=1 // pred_check_branch
      %1194 = sbr.rel (0) target = $region25
    $region24: #{tpu_custom_call.1} parent=1 // pred_region
      %1195 = dma.done [#allocation4], 16
    $region25: #{tpu_custom_call.1} parent=1 // pred_fallthru
      _
    %1196 = vsyncpa [#allocation3], 1
    %1197 = vsyncpa [#allocation6], 1
    %1198 = vsyncpa [#allocation4], 1

</llo_original>
